<compile_context>
chip_gen: v7x
topology: tpu7x:2x2x1
jax: 0.10.0
libtpu: 0.0.40
codegen_flags: <defaults>
</compile_context>

<pallas_src>
import functools

import jax
import jax.numpy as jnp
from jax.experimental import pallas as pl
from jax.experimental.pallas import tpu as pltpu


# ----------------------------------------------------------------------------
# Fused kernel (one grid step == one batch element, full network)
# ----------------------------------------------------------------------------
def _make_fused_kernel(num_layers, kernel_size):
    K = kernel_size
    pad = K // 2

    def elu(v):
        return jnp.where(v > 0, v, jnp.exp(jnp.minimum(v, 0.0)) - 1.0)

    def kernel(*refs):
        # refs = (x_ref, w1, b1, ..., wL, bL, wfc, bfc, out_ref)
        x_ref = refs[0]
        layer_refs = refs[1:1 + 2 * num_layers]
        wfc_ref, bfc_ref, out_ref = refs[1 + 2 * num_layers:]

        L = x_ref.shape[0]

        # (L, L) anti-diagonal permutation: rev @ y flips y along the length axis.
        row = jax.lax.broadcasted_iota(jnp.int32, (L, L), 0)
        col = jax.lax.broadcasted_iota(jnp.int32, (L, L), 1)
        rev = (row + col == L - 1).astype(jnp.float32)

        y = x_ref[...].astype(jnp.float32)                      # (L, Cin)
        for layer in range(num_layers):
            w_ref = layer_refs[2 * layer]                       # (K*Cin, 2*Cout)
            b_ref = layer_refs[2 * layer + 1]                   # (1, 2*Cout)
            cin = y.shape[1]
            cout = w_ref.shape[1] // 2

            # Zero-pad along L in VMEM (activations never touch HBM between layers).
            zpad = jnp.zeros((pad, cin), jnp.float32)
            ypad = jnp.concatenate([zpad, y, zpad], axis=0)      # (L + K - 1, Cin)
            # im2col over the K-tap window -> ONE MXU matmul covers both directions.
            xcat = jnp.concatenate([ypad[k:k + L, :] for k in range(K)], axis=-1)
            pre = jnp.dot(xcat, w_ref[...],
                          preferred_element_type=jnp.float32) + b_ref[...]
            act = elu(pre)                                       # (L, 2*Cout)
            # Backward half must be length-flipped (tap-reversal identity).
            act_flip = jnp.dot(rev, act, preferred_element_type=jnp.float32)
            lane = jax.lax.broadcasted_iota(jnp.int32, act.shape, 1)
            y = jnp.where(lane < cout, act, act_flip)
            # TODO(synk): nn.Dropout(p=0.05) is identity in eval mode; no mask applied.

        # Head: mean over L fused with FC (linearity: mean(y) @ W == mean(y @ W)).
        fc = jnp.dot(y, wfc_ref[...], preferred_element_type=jnp.float32)  # (L, nc)
        out_ref[...] = jnp.mean(fc, axis=0, keepdims=True) + bfc_ref[...]

    return kernel


# ----------------------------------------------------------------------------
# One-time parameter repacking (hoisted out of the forward pass)
# ----------------------------------------------------------------------------
def prepare_params(conv_params, fc_params):
    """Pack (wf, bf, wb, bb) per layer into a single merged (K*Cin, 2*Cout) weight
    (backward taps reversed so both directions share the same input) and a merged bias."""
    packed = []
    for (wf, bf, wb, bb) in conv_params:
        cout, cin, K = wf.shape
        wf_t = jnp.transpose(wf, (2, 1, 0))                     # (K, Cin, Cout)
        wb_rev = jnp.transpose(wb[:, :, ::-1], (2, 1, 0))       # tap-reversed backward conv
        w = jnp.concatenate([wf_t, wb_rev], axis=-1)            # (K, Cin, 2*Cout)
        w = w.reshape(K * cin, 2 * cout).astype(jnp.float32)
        b = jnp.concatenate([bf, bb])[None, :].astype(jnp.float32)
        packed.append((w, b))
    fc_w, fc_b = fc_params
    return packed, (jnp.transpose(fc_w).astype(jnp.float32),
                    fc_b[None, :].astype(jnp.float32))


# ----------------------------------------------------------------------------
# Wrapper
# ----------------------------------------------------------------------------
def bitcn_forward(x_ncl, packed_layers, packed_fc, kernel_size=3):
    """x_ncl: (B, in_channels, L) float32 -- PyTorch NCL layout."""
    assert kernel_size % 2 == 1, "padding=K//2 only preserves L for odd kernel_size"
    B, cin, L = x_ncl.shape
    x = jnp.transpose(x_ncl, (0, 2, 1)).astype(jnp.float32)     # (B, L, Cin)
    wfc, bfc = packed_fc
    nc = wfc.shape[1]
    num_layers = len(packed_layers)

    flat_params = []
    in_specs = [pl.BlockSpec((None, L, cin), lambda b: (b, 0, 0))]
    for (w, bias) in packed_layers:
        flat_params += [w, bias]
        in_specs += [pl.BlockSpec(w.shape, lambda b: (0, 0)),
                     pl.BlockSpec(bias.shape, lambda b: (0, 0))]
    flat_params += [wfc, bfc]
    in_specs += [pl.BlockSpec(wfc.shape, lambda b: (0, 0)),
                 pl.BlockSpec(bfc.shape, lambda b: (0, 0))]

    out = pl.pallas_call(
        _make_fused_kernel(num_layers, kernel_size),
        out_shape=jax.ShapeDtypeStruct((B, 1, nc), jnp.float32),
        grid=(B,),
        in_specs=in_specs,
        out_specs=pl.BlockSpec((None, 1, nc), lambda b: (b, 0, 0)),
        compiler_params=pltpu.CompilerParams(
            dimension_semantics=("parallel",)),
    )(x, *flat_params)
    return out.reshape(B, nc)


# ----------------------------------------------------------------------------
# Pure-JAX reference (mirrors the PyTorch forward exactly)
# ----------------------------------------------------------------------------
def bitcn_reference(x_ncl, conv_params, fc_params, kernel_size=3):
    pad = kernel_size // 2
    x = x_ncl.astype(jnp.float32)

    def conv1d(inp, w, b):
        out = jax.lax.conv_general_dilated(
            inp, w, window_strides=(1,), padding=[(pad, pad)],
            dimension_numbers=("NCH", "OIH", "NCH"))
        return out + b[None, :, None]

    for (wf, bf, wb, bb) in conv_params:
        xf = jax.nn.elu(conv1d(x, wf, bf))
        xb = jax.nn.elu(conv1d(x[:, :, ::-1], wb, bb))
        x = jnp.concatenate([xf, xb], axis=1)
    m = x.mean(axis=2)
    fc_w, fc_b = fc_params
    return m @ fc_w.T + fc_b


# ----------------------------------------------------------------------------
# Deterministic parameter construction (synthetic, PyTorch-shaped)
# ----------------------------------------------------------------------------
def make_params(in_channels, num_classes, num_channels, kernel_size=3):
    key = jax.random.PRNGKey(0)
    conv_params = []
    cin = in_channels
    for cout in num_channels:
        key, k1, k2, k3, k4 = jax.random.split(key, 5)
        wf = 0.1 * jax.random.normal(k1, (cout, cin, kernel_size), jnp.float32)
        bf = 0.1 * jax.random.normal(k2, (cout,), jnp.float32)
        wb = 0.1 * jax.random.normal(k3, (cout, cin, kernel_size), jnp.float32)
        bb = 0.1 * jax.random.normal(k4, (cout,), jnp.float32)
        conv_params.append((wf, bf, wb, bb))
        cin = 2 * cout
    key, k1, k2 = jax.random.split(key, 3)
    fc_w = 0.1 * jax.random.normal(k1, (num_classes, 2 * num_channels[-1]),
                                   jnp.float32)
    fc_b = 0.1 * jax.random.normal(k2, (num_classes,), jnp.float32)
    return conv_params, (fc_w, fc_b)


if __name__ == "__main__":
    # Small, module-consistent shapes: (batch, in_channels, seq_len)
    B, C_IN, L = 2, 4, 16
    NUM_CLASSES = 3
    NUM_CHANNELS = [8, 8]
    KERNEL_SIZE = 3

    conv_params, fc_params = make_params(C_IN, NUM_CLASSES, NUM_CHANNELS,
                                         KERNEL_SIZE)
    packed_layers, packed_fc = prepare_params(conv_params, fc_params)
    x = jax.random.normal(jax.random.PRNGKey(0), (B, C_IN, L), jnp.float32)

    fwd = jax.jit(functools.partial(bitcn_forward, kernel_size=KERNEL_SIZE))
    out = jax.block_until_ready(fwd(x, packed_layers, packed_fc))

    ref = bitcn_reference(x, conv_params, fc_params, KERNEL_SIZE)
    assert out.shape == (B, NUM_CLASSES), out.shape
    if not jnp.allclose(out, ref, atol=1e-4, rtol=1e-4):
        raise AssertionError(f"mismatch vs reference:\n{out}\n{ref}")
    print("KERNEL_OK")
</pallas_src>

<mosaic_0001>
module attributes {stable_mosaic.version = 11 : i64} {
  func.func @kernel(%arg0: i32, %arg1: memref<1x16x4xf32, #tpu.memory_space<vmem>>, %arg2: memref<12x16xf32, #tpu.memory_space<vmem>>, %arg3: memref<1x16xf32, #tpu.memory_space<vmem>>, %arg4: memref<48x16xf32, #tpu.memory_space<vmem>>, %arg5: memref<1x16xf32, #tpu.memory_space<vmem>>, %arg6: memref<16x3xf32, #tpu.memory_space<vmem>>, %arg7: memref<1x3xf32, #tpu.memory_space<vmem>>, %arg8: memref<1x1x3xf32, #tpu.memory_space<vmem>>) attributes {dimension_semantics = [#tpu.dimension_semantics<parallel>], iteration_bounds = array<i64: 2>, scalar_prefetch = 0 : i64, scratch_operands = 0 : i64, tpu.core_type = #tpu.core_type<tc>, window_params = [{transform_indices = @transform_0, window_bounds = array<i64: 1, 16, 4>}, {pipeline_mode = #tpu.pipeline_mode<synchronous>, transform_indices = @transform_1, window_bounds = array<i64: 12, 16>}, {pipeline_mode = #tpu.pipeline_mode<synchronous>, transform_indices = @transform_2, window_bounds = array<i64: 1, 16>}, {pipeline_mode = #tpu.pipeline_mode<synchronous>, transform_indices = @transform_3, window_bounds = array<i64: 48, 16>}, {pipeline_mode = #tpu.pipeline_mode<synchronous>, transform_indices = @transform_4, window_bounds = array<i64: 1, 16>}, {pipeline_mode = #tpu.pipeline_mode<synchronous>, transform_indices = @transform_5, window_bounds = array<i64: 16, 3>}, {pipeline_mode = #tpu.pipeline_mode<synchronous>, transform_indices = @transform_6, window_bounds = array<i64: 1, 3>}, {transform_indices = @transform_7, window_bounds = array<i64: 1, 1, 3>}]} {
    %0 = tpu.iota {dimensions = array<i32: 0>} : vector<16x16xi32>
    %1 = tpu.iota {dimensions = array<i32: 1>} : vector<16x16xi32>
    %2 = arith.addi %0, %1 : vector<16x16xi32>
    %c15_i32 = arith.constant 15 : i32
    %3 = vector.broadcast %c15_i32 : i32 to vector<16x16xi32>
    %4 = arith.cmpi eq, %2, %3 : vector<16x16xi32>
    %5 = arith.extui %4 : vector<16x16xi1> to vector<16x16xi32>
    %6 = arith.sitofp %5 : vector<16x16xi32> to vector<16x16xf32>
    %c0 = arith.constant 0 : index
    %c0_0 = arith.constant 0 : index
    %c0_1 = arith.constant 0 : index
    %7 = vector.load %arg1[%c0, %c0_0, %c0_1] : memref<1x16x4xf32, #tpu.memory_space<vmem>>, vector<1x16x4xf32>
    %8 = vector.shape_cast %7 : vector<1x16x4xf32> to vector<16x4xf32>
    %cst = arith.constant 0.000000e+00 : f32
    %9 = vector.broadcast %cst : f32 to vector<1x4xf32>
    %10 = tpu.concatenate %9, %8, %9 in 0 : vector<1x4xf32>, vector<16x4xf32>, vector<1x4xf32> -> vector<18x4xf32>
    %11 = vector.extract_strided_slice %10 {offsets = [0, 0], sizes = [16, 4], strides = [1, 1]} : vector<18x4xf32> to vector<16x4xf32>
    %12 = vector.extract_strided_slice %10 {offsets = [1, 0], sizes = [16, 4], strides = [1, 1]} : vector<18x4xf32> to vector<16x4xf32>
    %13 = vector.extract_strided_slice %10 {offsets = [2, 0], sizes = [16, 4], strides = [1, 1]} : vector<18x4xf32> to vector<16x4xf32>
    %14 = tpu.concatenate %11, %12, %13 in 1 : vector<16x4xf32>, vector<16x4xf32>, vector<16x4xf32> -> vector<16x12xf32>
    %c0_2 = arith.constant 0 : index
    %c0_3 = arith.constant 0 : index
    %15 = vector.load %arg2[%c0_2, %c0_3] : memref<12x16xf32, #tpu.memory_space<vmem>>, vector<12x16xf32>
    %cst_4 = arith.constant dense<0.000000e+00> : vector<16x16xf32>
    %16 = tpu.matmul %14, %15, %cst_4 {dimension_numbers = #tpu.dot_dimension_numbers<[1], [0], [0], [1], [0, 0, 1, 1], [], []>} : vector<16x12xf32>, vector<12x16xf32>, vector<16x16xf32> -> vector<16x16xf32>
    %c0_5 = arith.constant 0 : index
    %c0_6 = arith.constant 0 : index
    %17 = vector.load %arg3[%c0_5, %c0_6] : memref<1x16xf32, #tpu.memory_space<vmem>>, vector<1x16xf32>
    %18 = vector.broadcast %17 : vector<1x16xf32> to vector<16x16xf32>
    %19 = arith.addf %16, %18 : vector<16x16xf32>
    %cst_7 = arith.constant 0.000000e+00 : f32
    %20 = vector.broadcast %cst_7 : f32 to vector<16x16xf32>
    %21 = arith.cmpf ogt, %19, %20 : vector<16x16xf32>
    %cst_8 = arith.constant 0.000000e+00 : f32
    %22 = vector.broadcast %cst_8 : f32 to vector<16x16xf32>
    %23 = arith.minimumf %19, %22 : vector<16x16xf32>
    %24 = math.exp %23 : vector<16x16xf32>
    %cst_9 = arith.constant 1.000000e+00 : f32
    %25 = vector.broadcast %cst_9 : f32 to vector<16x16xf32>
    %26 = arith.subf %24, %25 : vector<16x16xf32>
    %27 = arith.select %21, %19, %26 : vector<16x16xi1>, vector<16x16xf32>
    %cst_10 = arith.constant dense<0.000000e+00> : vector<16x16xf32>
    %28 = tpu.matmul %6, %27, %cst_10 {dimension_numbers = #tpu.dot_dimension_numbers<[1], [0], [0], [1], [0, 0, 1, 1], [], []>} : vector<16x16xf32>, vector<16x16xf32>, vector<16x16xf32> -> vector<16x16xf32>
    %29 = tpu.iota {dimensions = array<i32: 1>} : vector<16x16xi32>
    %c8_i32 = arith.constant 8 : i32
    %30 = vector.broadcast %c8_i32 : i32 to vector<16x16xi32>
    %31 = arith.cmpi slt, %29, %30 : vector<16x16xi32>
    %32 = arith.select %31, %27, %28 : vector<16x16xi1>, vector<16x16xf32>
    %cst_11 = arith.constant 0.000000e+00 : f32
    %33 = vector.broadcast %cst_11 : f32 to vector<1x16xf32>
    %34 = tpu.concatenate %33, %32, %33 in 0 : vector<1x16xf32>, vector<16x16xf32>, vector<1x16xf32> -> vector<18x16xf32>
    %35 = vector.extract_strided_slice %34 {offsets = [0, 0], sizes = [16, 16], strides = [1, 1]} : vector<18x16xf32> to vector<16x16xf32>
    %36 = vector.extract_strided_slice %34 {offsets = [1, 0], sizes = [16, 16], strides = [1, 1]} : vector<18x16xf32> to vector<16x16xf32>
    %37 = vector.extract_strided_slice %34 {offsets = [2, 0], sizes = [16, 16], strides = [1, 1]} : vector<18x16xf32> to vector<16x16xf32>
    %38 = tpu.concatenate %35, %36, %37 in 1 : vector<16x16xf32>, vector<16x16xf32>, vector<16x16xf32> -> vector<16x48xf32>
    %c0_12 = arith.constant 0 : index
    %c0_13 = arith.constant 0 : index
    %39 = vector.load %arg4[%c0_12, %c0_13] : memref<48x16xf32, #tpu.memory_space<vmem>>, vector<48x16xf32>
    %cst_14 = arith.constant dense<0.000000e+00> : vector<16x16xf32>
    %40 = tpu.matmul %38, %39, %cst_14 {dimension_numbers = #tpu.dot_dimension_numbers<[1], [0], [0], [1], [0, 0, 1, 1], [], []>} : vector<16x48xf32>, vector<48x16xf32>, vector<16x16xf32> -> vector<16x16xf32>
    %c0_15 = arith.constant 0 : index
    %c0_16 = arith.constant 0 : index
    %41 = vector.load %arg5[%c0_15, %c0_16] : memref<1x16xf32, #tpu.memory_space<vmem>>, vector<1x16xf32>
    %42 = vector.broadcast %41 : vector<1x16xf32> to vector<16x16xf32>
    %43 = arith.addf %40, %42 : vector<16x16xf32>
    %cst_17 = arith.constant 0.000000e+00 : f32
    %44 = vector.broadcast %cst_17 : f32 to vector<16x16xf32>
    %45 = arith.cmpf ogt, %43, %44 : vector<16x16xf32>
    %cst_18 = arith.constant 0.000000e+00 : f32
    %46 = vector.broadcast %cst_18 : f32 to vector<16x16xf32>
    %47 = arith.minimumf %43, %46 : vector<16x16xf32>
    %48 = math.exp %47 : vector<16x16xf32>
    %cst_19 = arith.constant 1.000000e+00 : f32
    %49 = vector.broadcast %cst_19 : f32 to vector<16x16xf32>
    %50 = arith.subf %48, %49 : vector<16x16xf32>
    %51 = arith.select %45, %43, %50 : vector<16x16xi1>, vector<16x16xf32>
    %cst_20 = arith.constant dense<0.000000e+00> : vector<16x16xf32>
    %52 = tpu.matmul %6, %51, %cst_20 {dimension_numbers = #tpu.dot_dimension_numbers<[1], [0], [0], [1], [0, 0, 1, 1], [], []>} : vector<16x16xf32>, vector<16x16xf32>, vector<16x16xf32> -> vector<16x16xf32>
    %53 = tpu.iota {dimensions = array<i32: 1>} : vector<16x16xi32>
    %c8_i32_21 = arith.constant 8 : i32
    %54 = vector.broadcast %c8_i32_21 : i32 to vector<16x16xi32>
    %55 = arith.cmpi slt, %53, %54 : vector<16x16xi32>
    %56 = arith.select %55, %51, %52 : vector<16x16xi1>, vector<16x16xf32>
    %c0_22 = arith.constant 0 : index
    %c0_23 = arith.constant 0 : index
    %57 = vector.load %arg6[%c0_22, %c0_23] : memref<16x3xf32, #tpu.memory_space<vmem>>, vector<16x3xf32>
    %cst_24 = arith.constant dense<0.000000e+00> : vector<16x3xf32>
    %58 = tpu.matmul %56, %57, %cst_24 {dimension_numbers = #tpu.dot_dimension_numbers<[1], [0], [0], [1], [0, 0, 1, 1], [], []>} : vector<16x16xf32>, vector<16x3xf32>, vector<16x3xf32> -> vector<16x3xf32>
    %cst_25 = arith.constant dense<0.000000e+00> : vector<3xf32>
    %59 = vector.multi_reduction <add>, %58, %cst_25 [0] : vector<16x3xf32> to vector<3xf32>
    %60 = vector.shape_cast %59 : vector<3xf32> to vector<1x3xf32>
    %cst_26 = arith.constant 1.600000e+01 : f32
    %61 = vector.broadcast %cst_26 : f32 to vector<1x3xf32>
    %62 = arith.divf %60, %61 : vector<1x3xf32>
    %c0_27 = arith.constant 0 : index
    %c0_28 = arith.constant 0 : index
    %63 = vector.load %arg7[%c0_27, %c0_28] : memref<1x3xf32, #tpu.memory_space<vmem>>, vector<1x3xf32>
    %64 = arith.addf %62, %63 : vector<1x3xf32>
    %c0_29 = arith.constant 0 : index
    %c0_30 = arith.constant 0 : index
    %c0_31 = arith.constant 0 : index
    %65 = vector.load %arg8[%c0_29, %c0_30, %c0_31] : memref<1x1x3xf32, #tpu.memory_space<vmem>>, vector<1x1x3xf32>
    %66 = vector.shape_cast %65 : vector<1x1x3xf32> to vector<1x3xf32>
    %67 = vector.shape_cast %64 : vector<1x3xf32> to vector<1x1x3xf32>
    tpu.vector_store %arg8[%c0_29, %c0_30, %c0_31], %67 {strides = array<i32>} : memref<1x1x3xf32, #tpu.memory_space<vmem>>, vector<1x1x3xf32>,
    return
  }
  func.func @transform_0(%arg0: i32) -> (i32, i32, i32) {
    %c0_i32 = arith.constant 0 : i32
    %c0_i32_0 = arith.constant 0 : i32
    %c0_i32_1 = arith.constant 0 : i32
    return %arg0, %c0_i32, %c0_i32_0 : i32, i32, i32
  }
  func.func @transform_1(%arg0: i32) -> (i32, i32) {
    %c0_i32 = arith.constant 0 : i32
    %c0_i32_0 = arith.constant 0 : i32
    %c0_i32_1 = arith.constant 0 : i32
    return %c0_i32, %c0_i32_0 : i32, i32
  }
  func.func @transform_2(%arg0: i32) -> (i32, i32) {
    %c0_i32 = arith.constant 0 : i32
    %c0_i32_0 = arith.constant 0 : i32
    %c0_i32_1 = arith.constant 0 : i32
    return %c0_i32, %c0_i32_0 : i32, i32
  }
  func.func @transform_3(%arg0: i32) -> (i32, i32) {
    %c0_i32 = arith.constant 0 : i32
    %c0_i32_0 = arith.constant 0 : i32
    %c0_i32_1 = arith.constant 0 : i32
    return %c0_i32, %c0_i32_0 : i32, i32
  }
  func.func @transform_4(%arg0: i32) -> (i32, i32) {
    %c0_i32 = arith.constant 0 : i32
    %c0_i32_0 = arith.constant 0 : i32
    %c0_i32_1 = arith.constant 0 : i32
    return %c0_i32, %c0_i32_0 : i32, i32
  }
  func.func @transform_5(%arg0: i32) -> (i32, i32) {
    %c0_i32 = arith.constant 0 : i32
    %c0_i32_0 = arith.constant 0 : i32
    %c0_i32_1 = arith.constant 0 : i32
    return %c0_i32, %c0_i32_0 : i32, i32
  }
  func.func @transform_6(%arg0: i32) -> (i32, i32) {
    %c0_i32 = arith.constant 0 : i32
    %c0_i32_0 = arith.constant 0 : i32
    %c0_i32_1 = arith.constant 0 : i32
    return %c0_i32, %c0_i32_0 : i32, i32
  }
  func.func @transform_7(%arg0: i32) -> (i32, i32, i32) {
    %c0_i32 = arith.constant 0 : i32
    %c0_i32_0 = arith.constant 0 : i32
    %c0_i32_1 = arith.constant 0 : i32
    return %arg0, %c0_i32, %c0_i32_0 : i32, i32, i32
  }
}

</mosaic_0001>

<llo_original>
// kernel: bitcn_forward.1
$region0: #{bitcn_forward.1}
  #allocation0 [shape = 'u32[]', space=smem, size = 0x4, offset = 0x4, fixed_abs, tag = 'smem constant byte address 0x4 - core index']
  #allocation1 [shape = 'u32[144,128]{1,0:T(1,128)}', space=vmem, size = 0x12000, scoped, tag = 'internal scratch']
  %s0 = inlined_call_operand.vmem [shape: f32[2,16,4], index: 0, kind: input, shape index: {}]
  %s1 = inlined_call_operand.vmem [shape: f32[12,16], index: 1, kind: input, shape index: {}]
  %s2 = inlined_call_operand.vmem [shape: f32[1,16], index: 2, kind: input, shape index: {}]
  %s3 = inlined_call_operand.vmem [shape: f32[48,16], index: 3, kind: input, shape index: {}]
  %s4 = inlined_call_operand.vmem [shape: f32[1,16], index: 4, kind: input, shape index: {}]
  %s5 = inlined_call_operand.vmem [shape: f32[16,3], index: 5, kind: input, shape index: {}]
  %s6 = inlined_call_operand.vmem [shape: f32[1,3], index: 6, kind: input, shape index: {}]
  %s7 = inlined_call_operand.hbm [shape: f32[2,1,3], index: 7, kind: output, shape index: {}]
  %s8 = sld [smem:[#allocation0]]
  $region61: #{bitcn_forward.1} parent=0
    _
  %s10 = ssub.s32 1, %s8
  %s11 = scalar_select 0, %s10, %s8
  $region1: #{bitcn_forward.1} parent=0
    #allocation2 [shape = 'u8[1024]{0}', space=vmem, size = 0x400, scoped, tag = 'output window, operand 0']
    #allocation3 [shape = 's32[2]{0}', space=sflag, size = 0x8, scoped, tag = 'scoped memory for bitcn_forward.1']
    %12 = vsyncpa [#allocation3], 0
    %s13 = scalar_lea.sflag [#allocation3], 1
    %14 = vsyncpa %s13, 0
    loop: start=0, step=1, limit=4
    $region2: #{bitcn_forward.1} parent=1 // loop_pre_header
      _
    $region3: #{bitcn_forward.1} parent=1 // loop_header
      %s16 = sphi 0, %s20
      %p17 = scmp.ge.s32.totalorder %s16, 4
      %s26 = sphi 0, %s28
      %s29 = sphi 0, %s26
      %s30 = sphi 0, %s29
      %s46 = sphi 0, %s30
      %s50 = sphi 0, %s50
      %s52 = sphi 0, %s50
      %s53 = sphi 0, %s52
      %s67 = sphi 0, %s53
      %s71 = sphi 0, %s71
      %s73 = sphi 0, %s71
      %s74 = sphi 0, %s73
      %s88 = sphi 0, %s74
      %s92 = sphi 0, %s92
      %s94 = sphi 0, %s92
      %s95 = sphi 0, %s94
      %s109 = sphi 0, %s95
      %s113 = sphi 0, %s113
      %s115 = sphi 0, %s113
      %s116 = sphi 0, %s115
      %s130 = sphi 0, %s116
      %s134 = sphi 0, %s134
      %s136 = sphi 0, %s134
      %s137 = sphi 0, %s136
      %s151 = sphi 0, %s137
      %s155 = sphi 0, %s155
      %s157 = sphi 0, %s155
      %s158 = sphi 0, %s157
      %s172 = sphi 0, %s158
      %s178 = sphi 0, %s180
      %s181 = sphi 0, %s178
      %s182 = sphi 0, %s181
      %s198 = sphi 0, %s182
    $region4: #{bitcn_forward.1} parent=1 // loop_header_branch
      %19 = sbr.rel (%p17) target = $region8
    $region5: #{bitcn_forward.1} parent=1 // loop_body
      %s21 = ssub.s32 %s16, 1
      %s22 = ssub.s32 %s16, 2
      %s23 = sadd.s32 %s16, 1
      %s24 = ssub.s32 %s16, %s23
      %p25 = scmp.eq.s32.totalorder %s24, 0
      %s27 = sadd.s32 %s26, 1
      %s28 = scalar_select %p25, %s26, %s27
      %p31 = pneg %p25
      %p32 = scmp.eq.s32.totalorder %s16, 1
      %p33 = por %p31, %p32
      %p34 = scmp.ne.s32.totalorder %s26, %s29
      %p35 = scmp.eq.s32.totalorder %s16, 0
      %p36 = por %p34, %p35
      %p37 = scmp.ne.s32.totalorder %s26, %s29
      %p38 = scmp.eq.s32.totalorder %s21, 1
      %p39 = por %p37, %p38
      %p40 = scmp.ne.s32.totalorder %s29, %s30
      %p41 = scmp.eq.s32.totalorder %s21, 0
      %p42 = por %p40, %p41
      %p43 = scmp.ne.s32.totalorder %s29, %s30
      %p44 = scmp.eq.s32.totalorder %s22, 1
      %p45 = por %p43, %p44
      %p47 = scmp.ne.s32.totalorder %s30, %s46
      %p48 = scmp.eq.s32.totalorder %s22, 0
      %p49 = por %p47, %p48
      %s51 = sadd.s32 %s50, 1
      %p54 = scmp.eq.s32.totalorder %s16, 1
      %p55 = scmp.ne.s32.totalorder %s50, %s52
      %p56 = scmp.eq.s32.totalorder %s16, 0
      %p57 = por %p55, %p56
      %p58 = scmp.ne.s32.totalorder %s50, %s52
      %p59 = scmp.eq.s32.totalorder %s21, 1
      %p60 = por %p58, %p59
      %p61 = scmp.ne.s32.totalorder %s52, %s53
      %p62 = scmp.eq.s32.totalorder %s21, 0
      %p63 = por %p61, %p62
      %p64 = scmp.ne.s32.totalorder %s52, %s53
      %p65 = scmp.eq.s32.totalorder %s22, 1
      %p66 = por %p64, %p65
      %p68 = scmp.ne.s32.totalorder %s53, %s67
      %p69 = scmp.eq.s32.totalorder %s22, 0
      %p70 = por %p68, %p69
      %s72 = sadd.s32 %s71, 1
      %p75 = scmp.eq.s32.totalorder %s16, 1
      %p76 = scmp.ne.s32.totalorder %s71, %s73
      %p77 = scmp.eq.s32.totalorder %s16, 0
      %p78 = por %p76, %p77
      %p79 = scmp.ne.s32.totalorder %s71, %s73
      %p80 = scmp.eq.s32.totalorder %s21, 1
      %p81 = por %p79, %p80
      %p82 = scmp.ne.s32.totalorder %s73, %s74
      %p83 = scmp.eq.s32.totalorder %s21, 0
      %p84 = por %p82, %p83
      %p85 = scmp.ne.s32.totalorder %s73, %s74
      %p86 = scmp.eq.s32.totalorder %s22, 1
      %p87 = por %p85, %p86
      %p89 = scmp.ne.s32.totalorder %s74, %s88
      %p90 = scmp.eq.s32.totalorder %s22, 0
      %p91 = por %p89, %p90
      %s93 = sadd.s32 %s92, 1
      %p96 = scmp.eq.s32.totalorder %s16, 1
      %p97 = scmp.ne.s32.totalorder %s92, %s94
      %p98 = scmp.eq.s32.totalorder %s16, 0
      %p99 = por %p97, %p98
      %p100 = scmp.ne.s32.totalorder %s92, %s94
      %p101 = scmp.eq.s32.totalorder %s21, 1
      %p102 = por %p100, %p101
      %p103 = scmp.ne.s32.totalorder %s94, %s95
      %p104 = scmp.eq.s32.totalorder %s21, 0
      %p105 = por %p103, %p104
      %p106 = scmp.ne.s32.totalorder %s94, %s95
      %p107 = scmp.eq.s32.totalorder %s22, 1
      %p108 = por %p106, %p107
      %p110 = scmp.ne.s32.totalorder %s95, %s109
      %p111 = scmp.eq.s32.totalorder %s22, 0
      %p112 = por %p110, %p111
      %s114 = sadd.s32 %s113, 1
      %p117 = scmp.eq.s32.totalorder %s16, 1
      %p118 = scmp.ne.s32.totalorder %s113, %s115
      %p119 = scmp.eq.s32.totalorder %s16, 0
      %p120 = por %p118, %p119
      %p121 = scmp.ne.s32.totalorder %s113, %s115
      %p122 = scmp.eq.s32.totalorder %s21, 1
      %p123 = por %p121, %p122
      %p124 = scmp.ne.s32.totalorder %s115, %s116
      %p125 = scmp.eq.s32.totalorder %s21, 0
      %p126 = por %p124, %p125
      %p127 = scmp.ne.s32.totalorder %s115, %s116
      %p128 = scmp.eq.s32.totalorder %s22, 1
      %p129 = por %p127, %p128
      %p131 = scmp.ne.s32.totalorder %s116, %s130
      %p132 = scmp.eq.s32.totalorder %s22, 0
      %p133 = por %p131, %p132
      %s135 = sadd.s32 %s134, 1
      %p138 = scmp.eq.s32.totalorder %s16, 1
      %p139 = scmp.ne.s32.totalorder %s134, %s136
      %p140 = scmp.eq.s32.totalorder %s16, 0
      %p141 = por %p139, %p140
      %p142 = scmp.ne.s32.totalorder %s134, %s136
      %p143 = scmp.eq.s32.totalorder %s21, 1
      %p144 = por %p142, %p143
      %p145 = scmp.ne.s32.totalorder %s136, %s137
      %p146 = scmp.eq.s32.totalorder %s21, 0
      %p147 = por %p145, %p146
      %p148 = scmp.ne.s32.totalorder %s136, %s137
      %p149 = scmp.eq.s32.totalorder %s22, 1
      %p150 = por %p148, %p149
      %p152 = scmp.ne.s32.totalorder %s137, %s151
      %p153 = scmp.eq.s32.totalorder %s22, 0
      %p154 = por %p152, %p153
      %s156 = sadd.s32 %s155, 1
      %p159 = scmp.eq.s32.totalorder %s16, 1
      %p160 = scmp.ne.s32.totalorder %s155, %s157
      %p161 = scmp.eq.s32.totalorder %s16, 0
      %p162 = por %p160, %p161
      %p163 = scmp.ne.s32.totalorder %s155, %s157
      %p164 = scmp.eq.s32.totalorder %s21, 1
      %p165 = por %p163, %p164
      %p166 = scmp.ne.s32.totalorder %s157, %s158
      %p167 = scmp.eq.s32.totalorder %s21, 0
      %p168 = por %p166, %p167
      %p169 = scmp.ne.s32.totalorder %s157, %s158
      %p170 = scmp.eq.s32.totalorder %s22, 1
      %p171 = por %p169, %p170
      %p173 = scmp.ne.s32.totalorder %s158, %s172
      %p174 = scmp.eq.s32.totalorder %s22, 0
      %p175 = por %p173, %p174
      %s176 = ssub.s32 %s16, %s23
      %p177 = scmp.eq.s32.totalorder %s176, 0
      %s179 = sadd.s32 %s178, 1
      %s180 = scalar_select %p177, %s178, %s179
      %p183 = pneg %p177
      %p184 = scmp.eq.s32.totalorder %s16, 1
      %p185 = por %p183, %p184
      %p186 = scmp.ne.s32.totalorder %s178, %s181
      %p187 = scmp.eq.s32.totalorder %s16, 0
      %p188 = por %p186, %p187
      %p189 = scmp.ne.s32.totalorder %s178, %s181
      %p190 = scmp.eq.s32.totalorder %s21, 1
      %p191 = por %p189, %p190
      %p192 = scmp.ne.s32.totalorder %s181, %s182
      %p193 = scmp.eq.s32.totalorder %s21, 0
      %p194 = por %p192, %p193
      %p195 = scmp.ne.s32.totalorder %s181, %s182
      %p196 = scmp.eq.s32.totalorder %s22, 1
      %p197 = por %p195, %p196
      %p199 = scmp.ne.s32.totalorder %s182, %s198
      %p200 = scmp.eq.s32.totalorder %s22, 0
      %p201 = por %p199, %p200
      %p202 = scmp.le.s32.totalorder 1, %s16
      %p203 = scmp.lt.s32.totalorder %s16, 3
      %p204 = pnand %p202, %p203
      %p205 = pneg %p204
      // Predicated region
      $region9: #{bitcn_forward.1} parent=5 // pred_check
        _
      $region10: #{bitcn_forward.1} parent=5 // pred_check_branch
        %207 = sbr.rel (%p204) target = $region12
      $region11: #{bitcn_forward.1} parent=5 // pred_region
        %s208 = ssub.s32 %s16, 1
        // Predicated region
        $region13: #{bitcn_forward.1} parent=11 // pred_check
          %p209 = pneg %p63
        $region14: #{bitcn_forward.1} parent=11 // pred_check_branch
          %211 = sbr.rel (%p209) target = $region16
        $region15: #{bitcn_forward.1} parent=11 // pred_region
          _
        $region16: #{bitcn_forward.1} parent=11 // pred_fallthru
          _
        // Predicated region
        $region17: #{bitcn_forward.1} parent=11 // pred_check
          %p212 = pneg %p84
        $region18: #{bitcn_forward.1} parent=11 // pred_check_branch
          %214 = sbr.rel (%p212) target = $region20
        $region19: #{bitcn_forward.1} parent=11 // pred_region
          _
        $region20: #{bitcn_forward.1} parent=11 // pred_fallthru
          _
        // Predicated region
        $region21: #{bitcn_forward.1} parent=11 // pred_check
          %p215 = pneg %p105
        $region22: #{bitcn_forward.1} parent=11 // pred_check_branch
          %217 = sbr.rel (%p215) target = $region24
        $region23: #{bitcn_forward.1} parent=11 // pred_region
          _
        $region24: #{bitcn_forward.1} parent=11 // pred_fallthru
          _
        // Predicated region
        $region25: #{bitcn_forward.1} parent=11 // pred_check
          %p218 = pneg %p126
        $region26: #{bitcn_forward.1} parent=11 // pred_check_branch
          %220 = sbr.rel (%p218) target = $region28
        $region27: #{bitcn_forward.1} parent=11 // pred_region
          _
        $region28: #{bitcn_forward.1} parent=11 // pred_fallthru
          _
        // Predicated region
        $region29: #{bitcn_forward.1} parent=11 // pred_check
          %p221 = pneg %p147
        $region30: #{bitcn_forward.1} parent=11 // pred_check_branch
          %223 = sbr.rel (%p221) target = $region32
        $region31: #{bitcn_forward.1} parent=11 // pred_region
          _
        $region32: #{bitcn_forward.1} parent=11 // pred_fallthru
          _
        // Predicated region
        $region33: #{bitcn_forward.1} parent=11 // pred_check
          %p224 = pneg %p168
        $region34: #{bitcn_forward.1} parent=11 // pred_check_branch
          %226 = sbr.rel (%p224) target = $region36
        $region35: #{bitcn_forward.1} parent=11 // pred_region
          _
        $region36: #{bitcn_forward.1} parent=11 // pred_fallthru
          _
      $region12: #{bitcn_forward.1} parent=5 // pred_fallthru
        _
      %p227 = scmp.lt.s32.totalorder %s16, 2
      // Predicated region
      $region37: #{bitcn_forward.1} parent=5 // pred_check
        %p228 = pneg %p227
      $region38: #{bitcn_forward.1} parent=5 // pred_check_branch
        %230 = sbr.rel (%p228) target = $region40
      $region39: #{bitcn_forward.1} parent=5 // pred_region
        // Predicated region
        $region41: #{bitcn_forward.1} parent=39 // pred_check
          %p231 = pneg %p36
        $region42: #{bitcn_forward.1} parent=39 // pred_check_branch
          %233 = sbr.rel (%p231) target = $region44
        $region43: #{bitcn_forward.1} parent=39 // pred_region
          %p234 = scmp.lt.s32.totalorder %s16, 1
          %s235 = scalar_select %p234, %s16, 1
          %s236 = smul.addr %s235, 2
          %s237 = smul.addr %s236, 8
          %s238 = scalar_lea.vmem %s0, %s237
        $region44: #{bitcn_forward.1} parent=39 // pred_fallthru
          _
      $region40: #{bitcn_forward.1} parent=5 // pred_fallthru
        _
      %p239 = scmp.le.s32.totalorder 1, %s16
      %p240 = scmp.lt.s32.totalorder %s16, 3
      %p241 = pnand %p239, %p240
      %p242 = pneg %p241
      // Predicated region
      $region45: #{bitcn_forward.1} parent=5 // pred_check
        _
      $region46: #{bitcn_forward.1} parent=5 // pred_check_branch
        %244 = sbr.rel (%p241) target = $region48
      $region47: #{bitcn_forward.1} parent=5 // pred_region
        %s245 = ssub.s32 %s16, 1
        %p246 = scmp.lt.s32.totalorder %s21, 1
        %s247 = scalar_select %p246, %s21, 1
        %s248 = smul.addr %s247, 2
        %s249 = smul.addr %s248, 8
        %s250 = scalar_lea.vmem %s0, %s249
        %p251 = pneg %p42
        %p252 = pneg %p39
        %p253 = pneg %p63
        %p254 = pneg %p60
        %p255 = pneg %p84
        %p256 = pneg %p81
        %p257 = pneg %p105
        %p258 = pneg %p102
        %p259 = pneg %p126
        %p260 = pneg %p123
        %p261 = pneg %p147
        %p262 = pneg %p144
        %p263 = pneg %p168
        %p264 = pneg %p165
        %p265 = pneg %p194
        %p266 = pneg %p191
        %s267 = sand.u32 %s181, 1
        %s268 = scalar_lea.sflag [#allocation3], %s267
        %s269 = sand.u32 %s181, 1
        %s270 = scalar_lea.vmem [#allocation2], %s269
        %p271 = scmp.lt.s32.totalorder %s21, 1
        %s272 = scalar_select %p271, %s21, 1
        %s273 = smul.addr %s272, 2
        %s274 = smul.addr %s273, 8
        %s275 = scalar_lea.vmem %s0, %s274
        %v276 = vlaneseq
        %v277 = vshrl.u32 %v276, 7
        %v278 = vadd.s32 %v277, 8
        %v279 = vlaneseq
        %v280 = vand.u32 %v279, 127
        %v281 = vadd.s32 %v277, %v280
        %v282 = vadd.s32 %v278, %v280
        %vm283 = vcmp.eq.s32.totalorder %v281, 15
        %vm284 = vcmp.eq.s32.totalorder %v282, 15
        %v285 = vsel %vm283, 1, 0
        %v286 = vsel %vm284, 1, 0
        %v287 = vcvt.s32.f32 %v285
        %v288 = vcvt.s32.f32 %v286
        %v289 = vld [vmem:[%s275] sm:$0xff]
        %v290 = vld [vmem:[%s275 + $0x8] sm:$0xff]
        %vm293 = vcmask 1040384
        %v294 = vrot.slane %v289, 7
        %v295 = vrot.slane %v290, 7
        %v296 = vsel %vm293, %v294, %v295
        %v300 = vsel %vm293, 0.0, %v294
        %v301 = vsel %vm293, %v295, 0.0
        %vm304 = vcmask 1046528
        %v305 = vrot.slane %v300, 1
        %v306 = vrot.slane %v296, 1
        %v307 = vsel %vm304, %v305, %v306
        %v308 = vrot.slane %v301, 1
        %v309 = vsel %vm304, %v306, %v308
        %310 = vrot.lane.b32.xlu0 %v307, 4
        %v311 = vpop.permute.xlu0 %310
        %312 = vrot.lane.b32.xlu0 %v309, 4
        %v313 = vpop.permute.xlu0 %312
        %vm316 = vcmask 1045504
        %v317 = vrot.slane %v300, 2
        %v318 = vrot.slane %v296, 2
        %v319 = vsel %vm316, %v317, %v318
        %v320 = vrot.slane %v301, 2
        %v321 = vsel %vm316, %v318, %v320
        %322 = vrot.lane.b32.xlu0 %v319, 8
        %v323 = vpop.permute.xlu0 %322
        %324 = vrot.lane.b32.xlu0 %v321, 8
        %v325 = vpop.permute.xlu0 %324
        %vm328 = vcmask 31744
        %v329 = vsel %vm328, %v300, %v311
        %v330 = vsel %vm328, %v296, %v313
        %vm331 = vcmask 64512
        %v332 = vsel %vm331, %v329, %v323
        %v333 = vsel %vm331, %v330, %v325
        %v334 = vld [vmem:[%s1] sm:$0xff]
        %v335 = vld [vmem:[%s1 + $0x8] sm:$0xf]
        %v336 = vld [vmem:[%s2] sm:$0x1]
        %v338 = vlaneseq
        %v339 = vshrl.u32 %v338, 7
        %v340 = vsub.s32 0, %v339
        %v341 = vrot.slane %v336, %v340
        %vm343 = vcmask 97280
        %v345 = vsel %vm343, %v332, 0
        %v348 = vsel %vm343, %v333, 0
        %vm350 = vcmask 1043456
        %v352 = vsel %vm350, %v335, 0
        %354 = vmatprep.subr.mxu0 0.0
        %355 = vmatpush1.msra.mxu0 %v334
        %356 = vmatprep.subr.mxu0 0.0
        %357 = vmatpush1.msra.mxu0 %v352
        %358 = vmatprep.subr.mxu0 0.0
        %359 = vmatpush1.msra.mxu0 0.0
        %360 = vmatprep.subr.mxu0 0.0
        %361 = vmatpush1.msra.mxu0 0.0
        %362 = vmatprep.subr.mxu0 0.0
        %363 = vmatpush1.msra.mxu0 0.0
        %364 = vmatprep.subr.mxu0 0.0
        %365 = vmatpush1.msra.mxu0 0.0
        %366 = vmatprep.subr.mxu0 0.0
        %367 = vmatpush1.msra.mxu0 0.0
        %368 = vmatprep.subr.mxu0 0.0
        %369 = vmatpush1.msra.mxu0 0.0
        %370 = vmatprep.subr.mxu0 0.0
        %371 = vmatpush1.msra.mxu0 0.0
        %372 = vmatprep.subr.mxu0 0.0
        %373 = vmatpush1.msra.mxu0 0.0
        %374 = vmatprep.subr.mxu0 0.0
        %375 = vmatpush1.msra.mxu0 0.0
        %376 = vmatprep.subr.mxu0 0.0
        %377 = vmatpush1.msra.mxu0 0.0
        %378 = vmatprep.subr.mxu0 0.0
        %379 = vmatpush1.msra.mxu0 0.0
        %380 = vmatprep.subr.mxu0 0.0
        %381 = vmatpush1.msra.mxu0 0.0
        %382 = vmatprep.subr.mxu0 0.0
        %383 = vmatpush1.msra.mxu0 0.0
        %384 = vmatprep.subr.mxu0 0.0
        %385 = vmatpush1.msra.mxu0 0.0
        %386 = vmatprep.subr.mxu0 0.0
        %387 = vmatpush1.msra.mxu0 0.0
        %388 = vmatprep.subr.mxu0 0.0
        %389 = vmatpush1.msra.mxu0 0.0
        %390 = vmatprep.subr.mxu0 0.0
        %391 = vmatpush1.msra.mxu0 0.0
        %392 = vmatprep.subr.mxu0 0.0
        %393 = vmatpush1.msra.mxu0 0.0
        %394 = vmatprep.subr.mxu0 0.0
        %395 = vmatpush1.msra.mxu0 0.0
        %396 = vmatprep.subr.mxu0 0.0
        %397 = vmatpush1.msra.mxu0 0.0
        %398 = vmatprep.subr.mxu0 0.0
        %399 = vmatpush1.msra.mxu0 0.0
        %400 = vmatprep.subr.mxu0 0.0
        %401 = vmatpush1.msra.mxu0 0.0
        %402 = vmatprep.subr.mxu0 0.0
        %403 = vmatpush1.msra.mxu0 0.0
        %404 = vmatprep.subr.mxu0 0.0
        %405 = vmatpush1.msra.mxu0 0.0
        %406 = vmatprep.subr.mxu0 0.0
        %407 = vmatpush1.msra.mxu0 0.0
        %408 = vmatprep.subr.mxu0 0.0
        %409 = vmatpush1.msra.mxu0 0.0
        %410 = vmatprep.subr.mxu0 0.0
        %411 = vmatpush1.msra.mxu0 0.0
        %412 = vmatprep.subr.mxu0 0.0
        %413 = vmatpush1.msra.mxu0 0.0
        %414 = vmatprep.subr.mxu0 0.0
        %415 = vmatpush1.msra.mxu0 0.0
        %416 = vmatprep.subr.mxu0 0.0
        %417 = vmatpush1.msra.mxu0 0.0
        %418 = vmatprep.mubr.f32.mxu0 0.0
        %419 = vmatmul.mubr.f32.gmra.mrb[0].mxu0 %v345
        %v420 = vpop.f32.mrb[0].mxu0
        %v421 = vadd.f32 %v341, %v420
        %v422 = vpop.f32.mrb[0].mxu0
        %423 = vmatprep.mubr.f32.mxu0 0.0
        %424 = vmatmul.mubr.f32.gmra.mrb[0].mxu0 %v348
        %v425 = vpop.f32.mrb[0].mxu0
        %v426 = vadd.f32 %v341, %v425
        %v427 = vpop.f32.mrb[0].mxu0
        %428 = vdwg.mxu0
        %vm429 = vcmp.gt.f32.partialorder %v421, 0.0
        %vm430 = vcmp.gt.f32.partialorder %v426, 0.0
        %v431 = vmin.f32 %v421, 0.0
        %v432 = vmin.f32 %v426, 0.0
        %v433 = vmul.f32 %v431, 1.442695
        %v434 = vpow.pop %v433
        %v435 = vmul.f32 %v432, 1.442695
        %v436 = vpow.pop %v435
        %v437 = vsub.f32 %v434, 1.0
        %v438 = vsub.f32 %v436, 1.0
        %v439 = vsel %vm429, %v421, %v437
        %v440 = vsel %vm430, %v426, %v438
        %vm441 = vcmask 130048
        %v443 = vsel %vm441, %v287, 0
        %v446 = vsel %vm441, %v288, 0
        %448 = vmatprep.subr.mxu0 0.0
        %449 = vmatpush1.msra.mxu0 %v439
        %450 = vmatprep.subr.mxu0 0.0
        %451 = vmatpush1.msra.mxu0 %v440
        %452 = vmatprep.subr.mxu0 0.0
        %453 = vmatpush1.msra.mxu0 0.0
        %454 = vmatprep.subr.mxu0 0.0
        %455 = vmatpush1.msra.mxu0 0.0
        %456 = vmatprep.subr.mxu0 0.0
        %457 = vmatpush1.msra.mxu0 0.0
        %458 = vmatprep.subr.mxu0 0.0
        %459 = vmatpush1.msra.mxu0 0.0
        %460 = vmatprep.subr.mxu0 0.0
        %461 = vmatpush1.msra.mxu0 0.0
        %462 = vmatprep.subr.mxu0 0.0
        %463 = vmatpush1.msra.mxu0 0.0
        %464 = vmatprep.subr.mxu0 0.0
        %465 = vmatpush1.msra.mxu0 0.0
        %466 = vmatprep.subr.mxu0 0.0
        %467 = vmatpush1.msra.mxu0 0.0
        %468 = vmatprep.subr.mxu0 0.0
        %469 = vmatpush1.msra.mxu0 0.0
        %470 = vmatprep.subr.mxu0 0.0
        %471 = vmatpush1.msra.mxu0 0.0
        %472 = vmatprep.subr.mxu0 0.0
        %473 = vmatpush1.msra.mxu0 0.0
        %474 = vmatprep.subr.mxu0 0.0
        %475 = vmatpush1.msra.mxu0 0.0
        %476 = vmatprep.subr.mxu0 0.0
        %477 = vmatpush1.msra.mxu0 0.0
        %478 = vmatprep.subr.mxu0 0.0
        %479 = vmatpush1.msra.mxu0 0.0
        %480 = vmatprep.subr.mxu0 0.0
        %481 = vmatpush1.msra.mxu0 0.0
        %482 = vmatprep.subr.mxu0 0.0
        %483 = vmatpush1.msra.mxu0 0.0
        %484 = vmatprep.subr.mxu0 0.0
        %485 = vmatpush1.msra.mxu0 0.0
        %486 = vmatprep.subr.mxu0 0.0
        %487 = vmatpush1.msra.mxu0 0.0
        %488 = vmatprep.subr.mxu0 0.0
        %489 = vmatpush1.msra.mxu0 0.0
        %490 = vmatprep.subr.mxu0 0.0
        %491 = vmatpush1.msra.mxu0 0.0
        %492 = vmatprep.subr.mxu0 0.0
        %493 = vmatpush1.msra.mxu0 0.0
        %494 = vmatprep.subr.mxu0 0.0
        %495 = vmatpush1.msra.mxu0 0.0
        %496 = vmatprep.subr.mxu0 0.0
        %497 = vmatpush1.msra.mxu0 0.0
        %498 = vmatprep.subr.mxu0 0.0
        %499 = vmatpush1.msra.mxu0 0.0
        %500 = vmatprep.subr.mxu0 0.0
        %501 = vmatpush1.msra.mxu0 0.0
        %502 = vmatprep.subr.mxu0 0.0
        %503 = vmatpush1.msra.mxu0 0.0
        %504 = vmatprep.subr.mxu0 0.0
        %505 = vmatpush1.msra.mxu0 0.0
        %506 = vmatprep.subr.mxu0 0.0
        %507 = vmatpush1.msra.mxu0 0.0
        %508 = vmatprep.subr.mxu0 0.0
        %509 = vmatpush1.msra.mxu0 0.0
        %510 = vmatprep.subr.mxu0 0.0
        %511 = vmatpush1.msra.mxu0 0.0
        %512 = vmatprep.mubr.f32.mxu0 0.0
        %513 = vmatmul.mubr.f32.gmra.mrb[0].mxu0 %v443
        %v514 = vpop.f32.mrb[0].mxu0
        %v515 = vadd.f32 0.0, %v514
        %v516 = vpop.f32.mrb[0].mxu0
        %517 = vmatprep.mubr.f32.mxu0 0.0
        %518 = vmatmul.mubr.f32.gmra.mrb[0].mxu0 %v446
        %v519 = vpop.f32.mrb[0].mxu0
        %v520 = vadd.f32 0.0, %v519
        %v521 = vpop.f32.mrb[0].mxu0
        %522 = vdwg.mxu0
        %vm523 = vcmp.lt.s32.totalorder %v280, 8
        %v524 = vsel %vm523, %v439, %v515
        %v525 = vsel %vm523, %v440, %v520
        %v528 = vrot.slane %v524, 7
        %v529 = vrot.slane %v525, 7
        %v530 = vsel %vm293, %v528, %v529
        %v534 = vsel %vm293, 0.0, %v528
        %v535 = vsel %vm293, %v529, 0.0
        %v538 = vrot.slane %v534, 1
        %v539 = vrot.slane %v530, 1
        %v540 = vsel %vm304, %v538, %v539
        %v541 = vrot.slane %v535, 1
        %v542 = vsel %vm304, %v539, %v541
        %543 = vrot.lane.b32.xlu0 %v540, 16
        %v544 = vpop.permute.xlu0 %543
        %545 = vrot.lane.b32.xlu0 %v542, 16
        %v546 = vpop.permute.xlu0 %545
        %v549 = vrot.slane %v534, 2
        %v550 = vrot.slane %v530, 2
        %v551 = vsel %vm316, %v549, %v550
        %v552 = vrot.slane %v535, 2
        %v553 = vsel %vm316, %v550, %v552
        %554 = vrot.lane.b32.xlu0 %v551, 32
        %v555 = vpop.permute.xlu0 %554
        %556 = vrot.lane.b32.xlu0 %v553, 32
        %v557 = vpop.permute.xlu0 %556
        %v560 = vsel %vm441, %v534, %v544
        %v561 = vsel %vm441, %v530, %v546
        %vm562 = vcmask 261120
        %v563 = vsel %vm562, %v560, %v555
        %v564 = vsel %vm562, %v561, %v557
        %v565 = vld [vmem:[%s3] sm:$0xff]
        %v566 = vld [vmem:[%s3 + $0x8] sm:$0xff]
        %v567 = vld [vmem:[%s3 + $0x10] sm:$0xff]
        %v568 = vld [vmem:[%s3 + $0x18] sm:$0xff]
        %v569 = vld [vmem:[%s3 + $0x20] sm:$0xff]
        %v570 = vld [vmem:[%s3 + $0x28] sm:$0xff]
        %v571 = vld [vmem:[%s4] sm:$0x1]
        %v573 = vlaneseq
        %v574 = vshrl.u32 %v573, 7
        %v575 = vsub.s32 0, %v574
        %v576 = vrot.slane %v571, %v575
        %vm578 = vcmask 392192
        %v580 = vsel %vm578, %v563, 0
        %v583 = vsel %vm578, %v564, 0
        %585 = vmatprep.subr.mxu0 0.0
        %586 = vmatpush1.msra.mxu0 %v565
        %587 = vmatprep.subr.mxu0 0.0
        %588 = vmatpush1.msra.mxu0 %v566
        %589 = vmatprep.subr.mxu0 0.0
        %590 = vmatpush1.msra.mxu0 %v567
        %591 = vmatprep.subr.mxu0 0.0
        %592 = vmatpush1.msra.mxu0 %v568
        %593 = vmatprep.subr.mxu0 0.0
        %594 = vmatpush1.msra.mxu0 %v569
        %595 = vmatprep.subr.mxu0 0.0
        %596 = vmatpush1.msra.mxu0 %v570
        %597 = vmatprep.subr.mxu0 0.0
        %598 = vmatpush1.msra.mxu0 0.0
        %599 = vmatprep.subr.mxu0 0.0
        %600 = vmatpush1.msra.mxu0 0.0
        %601 = vmatprep.subr.mxu0 0.0
        %602 = vmatpush1.msra.mxu0 0.0
        %603 = vmatprep.subr.mxu0 0.0
        %604 = vmatpush1.msra.mxu0 0.0
        %605 = vmatprep.subr.mxu0 0.0
        %606 = vmatpush1.msra.mxu0 0.0
        %607 = vmatprep.subr.mxu0 0.0
        %608 = vmatpush1.msra.mxu0 0.0
        %609 = vmatprep.subr.mxu0 0.0
        %610 = vmatpush1.msra.mxu0 0.0
        %611 = vmatprep.subr.mxu0 0.0
        %612 = vmatpush1.msra.mxu0 0.0
        %613 = vmatprep.subr.mxu0 0.0
        %614 = vmatpush1.msra.mxu0 0.0
        %615 = vmatprep.subr.mxu0 0.0
        %616 = vmatpush1.msra.mxu0 0.0
        %617 = vmatprep.subr.mxu0 0.0
        %618 = vmatpush1.msra.mxu0 0.0
        %619 = vmatprep.subr.mxu0 0.0
        %620 = vmatpush1.msra.mxu0 0.0
        %621 = vmatprep.subr.mxu0 0.0
        %622 = vmatpush1.msra.mxu0 0.0
        %623 = vmatprep.subr.mxu0 0.0
        %624 = vmatpush1.msra.mxu0 0.0
        %625 = vmatprep.subr.mxu0 0.0
        %626 = vmatpush1.msra.mxu0 0.0
        %627 = vmatprep.subr.mxu0 0.0
        %628 = vmatpush1.msra.mxu0 0.0
        %629 = vmatprep.subr.mxu0 0.0
        %630 = vmatpush1.msra.mxu0 0.0
        %631 = vmatprep.subr.mxu0 0.0
        %632 = vmatpush1.msra.mxu0 0.0
        %633 = vmatprep.subr.mxu0 0.0
        %634 = vmatpush1.msra.mxu0 0.0
        %635 = vmatprep.subr.mxu0 0.0
        %636 = vmatpush1.msra.mxu0 0.0
        %637 = vmatprep.subr.mxu0 0.0
        %638 = vmatpush1.msra.mxu0 0.0
        %639 = vmatprep.subr.mxu0 0.0
        %640 = vmatpush1.msra.mxu0 0.0
        %641 = vmatprep.subr.mxu0 0.0
        %642 = vmatpush1.msra.mxu0 0.0
        %643 = vmatprep.subr.mxu0 0.0
        %644 = vmatpush1.msra.mxu0 0.0
        %645 = vmatprep.subr.mxu0 0.0
        %646 = vmatpush1.msra.mxu0 0.0
        %647 = vmatprep.subr.mxu0 0.0
        %648 = vmatpush1.msra.mxu0 0.0
        %649 = vmatprep.mubr.f32.mxu0 0.0
        %650 = vmatmul.mubr.f32.gmra.mrb[0].mxu0 %v580
        %v651 = vpop.f32.mrb[0].mxu0
        %v652 = vadd.f32 %v576, %v651
        %v653 = vpop.f32.mrb[0].mxu0
        %654 = vmatprep.mubr.f32.mxu0 0.0
        %655 = vmatmul.mubr.f32.gmra.mrb[0].mxu0 %v583
        %v656 = vpop.f32.mrb[0].mxu0
        %v657 = vadd.f32 %v576, %v656
        %v658 = vpop.f32.mrb[0].mxu0
        %659 = vdwg.mxu0
        %vm660 = vcmp.gt.f32.partialorder %v652, 0.0
        %vm661 = vcmp.gt.f32.partialorder %v657, 0.0
        %v662 = vmin.f32 %v652, 0.0
        %v663 = vmin.f32 %v657, 0.0
        %v664 = vmul.f32 %v662, 1.442695
        %v665 = vpow.pop %v664
        %v666 = vmul.f32 %v663, 1.442695
        %v667 = vpow.pop %v666
        %v668 = vsub.f32 %v665, 1.0
        %v669 = vsub.f32 %v667, 1.0
        %v670 = vsel %vm660, %v652, %v668
        %v671 = vsel %vm661, %v657, %v669
        %672 = vmatprep.subr.mxu0 0.0
        %673 = vmatpush1.msra.mxu0 %v670
        %674 = vmatprep.subr.mxu0 0.0
        %675 = vmatpush1.msra.mxu0 %v671
        %676 = vmatprep.subr.mxu0 0.0
        %677 = vmatpush1.msra.mxu0 0.0
        %678 = vmatprep.subr.mxu0 0.0
        %679 = vmatpush1.msra.mxu0 0.0
        %680 = vmatprep.subr.mxu0 0.0
        %681 = vmatpush1.msra.mxu0 0.0
        %682 = vmatprep.subr.mxu0 0.0
        %683 = vmatpush1.msra.mxu0 0.0
        %684 = vmatprep.subr.mxu0 0.0
        %685 = vmatpush1.msra.mxu0 0.0
        %686 = vmatprep.subr.mxu0 0.0
        %687 = vmatpush1.msra.mxu0 0.0
        %688 = vmatprep.subr.mxu0 0.0
        %689 = vmatpush1.msra.mxu0 0.0
        %690 = vmatprep.subr.mxu0 0.0
        %691 = vmatpush1.msra.mxu0 0.0
        %692 = vmatprep.subr.mxu0 0.0
        %693 = vmatpush1.msra.mxu0 0.0
        %694 = vmatprep.subr.mxu0 0.0
        %695 = vmatpush1.msra.mxu0 0.0
        %696 = vmatprep.subr.mxu0 0.0
        %697 = vmatpush1.msra.mxu0 0.0
        %698 = vmatprep.subr.mxu0 0.0
        %699 = vmatpush1.msra.mxu0 0.0
        %700 = vmatprep.subr.mxu0 0.0
        %701 = vmatpush1.msra.mxu0 0.0
        %702 = vmatprep.subr.mxu0 0.0
        %703 = vmatpush1.msra.mxu0 0.0
        %704 = vmatprep.subr.mxu0 0.0
        %705 = vmatpush1.msra.mxu0 0.0
        %706 = vmatprep.subr.mxu0 0.0
        %707 = vmatpush1.msra.mxu0 0.0
        %708 = vmatprep.subr.mxu0 0.0
        %709 = vmatpush1.msra.mxu0 0.0
        %710 = vmatprep.subr.mxu0 0.0
        %711 = vmatpush1.msra.mxu0 0.0
        %712 = vmatprep.subr.mxu0 0.0
        %713 = vmatpush1.msra.mxu0 0.0
        %714 = vmatprep.subr.mxu0 0.0
        %715 = vmatpush1.msra.mxu0 0.0
        %716 = vmatprep.subr.mxu0 0.0
        %717 = vmatpush1.msra.mxu0 0.0
        %718 = vmatprep.subr.mxu0 0.0
        %719 = vmatpush1.msra.mxu0 0.0
        %720 = vmatprep.subr.mxu0 0.0
        %721 = vmatpush1.msra.mxu0 0.0
        %722 = vmatprep.subr.mxu0 0.0
        %723 = vmatpush1.msra.mxu0 0.0
        %724 = vmatprep.subr.mxu0 0.0
        %725 = vmatpush1.msra.mxu0 0.0
        %726 = vmatprep.subr.mxu0 0.0
        %727 = vmatpush1.msra.mxu0 0.0
        %728 = vmatprep.subr.mxu0 0.0
        %729 = vmatpush1.msra.mxu0 0.0
        %730 = vmatprep.subr.mxu0 0.0
        %731 = vmatpush1.msra.mxu0 0.0
        %732 = vmatprep.subr.mxu0 0.0
        %733 = vmatpush1.msra.mxu0 0.0
        %734 = vmatprep.subr.mxu0 0.0
        %735 = vmatpush1.msra.mxu0 0.0
        %736 = vmatprep.mubr.f32.mxu0 0.0
        %737 = vmatmul.mubr.f32.gmra.mrb[0].mxu0 %v443
        %v738 = vpop.f32.mrb[0].mxu0
        %v739 = vadd.f32 0.0, %v738
        %v740 = vpop.f32.mrb[0].mxu0
        %741 = vmatprep.mubr.f32.mxu0 0.0
        %742 = vmatmul.mubr.f32.gmra.mrb[0].mxu0 %v446
        %v743 = vpop.f32.mrb[0].mxu0
        %v744 = vadd.f32 0.0, %v743
        %v745 = vpop.f32.mrb[0].mxu0
        %746 = vdwg.mxu0
        %v747 = vsel %vm523, %v670, %v739
        %v748 = vsel %vm523, %v671, %v744
        %v749 = vld [vmem:[%s5] sm:$0xff]
        %v750 = vld [vmem:[%s5 + $0x8] sm:$0xff]
        %v752 = vsel %vm441, %v747, 0
        %v755 = vsel %vm441, %v748, 0
        %757 = vmatprep.subr.mxu0 0.0
        %758 = vmatpush1.msra.mxu0 %v749
        %759 = vmatprep.subr.mxu0 0.0
        %760 = vmatpush1.msra.mxu0 %v750
        %761 = vmatprep.subr.mxu0 0.0
        %762 = vmatpush1.msra.mxu0 0.0
        %763 = vmatprep.subr.mxu0 0.0
        %764 = vmatpush1.msra.mxu0 0.0
        %765 = vmatprep.subr.mxu0 0.0
        %766 = vmatpush1.msra.mxu0 0.0
        %767 = vmatprep.subr.mxu0 0.0
        %768 = vmatpush1.msra.mxu0 0.0
        %769 = vmatprep.subr.mxu0 0.0
        %770 = vmatpush1.msra.mxu0 0.0
        %771 = vmatprep.subr.mxu0 0.0
        %772 = vmatpush1.msra.mxu0 0.0
        %773 = vmatprep.subr.mxu0 0.0
        %774 = vmatpush1.msra.mxu0 0.0
        %775 = vmatprep.subr.mxu0 0.0
        %776 = vmatpush1.msra.mxu0 0.0
        %777 = vmatprep.subr.mxu0 0.0
        %778 = vmatpush1.msra.mxu0 0.0
        %779 = vmatprep.subr.mxu0 0.0
        %780 = vmatpush1.msra.mxu0 0.0
        %781 = vmatprep.subr.mxu0 0.0
        %782 = vmatpush1.msra.mxu0 0.0
        %783 = vmatprep.subr.mxu0 0.0
        %784 = vmatpush1.msra.mxu0 0.0
        %785 = vmatprep.subr.mxu0 0.0
        %786 = vmatpush1.msra.mxu0 0.0
        %787 = vmatprep.subr.mxu0 0.0
        %788 = vmatpush1.msra.mxu0 0.0
        %789 = vmatprep.subr.mxu0 0.0
        %790 = vmatpush1.msra.mxu0 0.0
        %791 = vmatprep.subr.mxu0 0.0
        %792 = vmatpush1.msra.mxu0 0.0
        %793 = vmatprep.subr.mxu0 0.0
        %794 = vmatpush1.msra.mxu0 0.0
        %795 = vmatprep.subr.mxu0 0.0
        %796 = vmatpush1.msra.mxu0 0.0
        %797 = vmatprep.subr.mxu0 0.0
        %798 = vmatpush1.msra.mxu0 0.0
        %799 = vmatprep.subr.mxu0 0.0
        %800 = vmatpush1.msra.mxu0 0.0
        %801 = vmatprep.subr.mxu0 0.0
        %802 = vmatpush1.msra.mxu0 0.0
        %803 = vmatprep.subr.mxu0 0.0
        %804 = vmatpush1.msra.mxu0 0.0
        %805 = vmatprep.subr.mxu0 0.0
        %806 = vmatpush1.msra.mxu0 0.0
        %807 = vmatprep.subr.mxu0 0.0
        %808 = vmatpush1.msra.mxu0 0.0
        %809 = vmatprep.subr.mxu0 0.0
        %810 = vmatpush1.msra.mxu0 0.0
        %811 = vmatprep.subr.mxu0 0.0
        %812 = vmatpush1.msra.mxu0 0.0
        %813 = vmatprep.subr.mxu0 0.0
        %814 = vmatpush1.msra.mxu0 0.0
        %815 = vmatprep.subr.mxu0 0.0
        %816 = vmatpush1.msra.mxu0 0.0
        %817 = vmatprep.subr.mxu0 0.0
        %818 = vmatpush1.msra.mxu0 0.0
        %819 = vmatprep.subr.mxu0 0.0
        %820 = vmatpush1.msra.mxu0 0.0
        %821 = vmatprep.mubr.f32.mxu0 0.0
        %822 = vmatmul.mubr.f32.gmra.mrb[0].mxu0 %v752
        %v823 = vpop.f32.mrb[0].mxu0
        %v824 = vadd.f32 0.0, %v823
        %v825 = vpop.f32.mrb[0].mxu0
        %826 = vmatprep.mubr.f32.mxu0 0.0
        %827 = vmatmul.mubr.f32.gmra.mrb[0].mxu0 %v755
        %v828 = vpop.f32.mrb[0].mxu0
        %v829 = vadd.f32 0.0, %v828
        %v830 = vpop.f32.mrb[0].mxu0
        %831 = vdwg.mxu0
        %vm832 = vcmask 23552
        %v833 = vsel %vm832, %v824, 0.0
        %v834 = vsel %vm832, %v829, 0.0
        %v835 = vadd.f32 %v833, %v834
        %v836 = vrot.slane %v835, 4
        %v837 = vadd.f32 %v835, %v836
        %v838 = vrot.slane %v837, 2
        %v839 = vadd.f32 %v837, %v838
        %v840 = vrot.slane %v839, 1
        %v841 = vadd.f32 %v839, %v840
        %v842 = vrcp.pop 16.0
        %v843 = vmul.f32 %v841, %v842
        %v844 = vld [vmem:[%s6] sm:$0x1]
        %v845 = vadd.f32 %v843, %v844
        %vm846 = vcmask 16384
        %847 = vst.msk [vmem:[%s270] sm:$0x1] %vm846, %v845
        %s848 = sand.u32 %s181, 1
        %s849 = scalar_lea.sflag [#allocation3], %s848
        %s850 = sand.u32 %s181, 1
        %s851 = scalar_lea.vmem [#allocation2], %s850
        // Predicated region
        $region49: #{bitcn_forward.1} parent=47 // pred_check
          %p852 = pneg %p191
        $region50: #{bitcn_forward.1} parent=47 // pred_check_branch
          %854 = sbr.rel (%p852) target = $region52
        $region51: #{bitcn_forward.1} parent=47 // pred_region
          %s856 = ssub.s32 16, 16
          %857 = vsyncadd %s849, %s856
          %s858 = smul.addr %s21, 16
          %s859 = scalar_lea.hbm %s7, %s858
          %s861 = sshll.u32 %s851, 4
          %s862 = int_to_ptr.vmem [resolvable:$true] %s861
          %864 = dma.vmem_to_hbm [thread:$0]  %s862, 16, %s859, %s849
        $region52: #{bitcn_forward.1} parent=47 // pred_fallthru
          _
      $region48: #{bitcn_forward.1} parent=5 // pred_fallthru
        _
      %p865 = scmp.le.s32.totalorder 2, %s16
      // Predicated region
      $region53: #{bitcn_forward.1} parent=5 // pred_check
        %p866 = pneg %p865
      $region54: #{bitcn_forward.1} parent=5 // pred_check_branch
        %868 = sbr.rel (%p866) target = $region56
      $region55: #{bitcn_forward.1} parent=5 // pred_region
        %s869 = ssub.s32 %s16, 2
        // Predicated region
        $region57: #{bitcn_forward.1} parent=55 // pred_check
          %p870 = pneg %p197
        $region58: #{bitcn_forward.1} parent=55 // pred_check_branch
          %872 = sbr.rel (%p870) target = $region60
        $region59: #{bitcn_forward.1} parent=55 // pred_region
          %s873 = sand.u32 %s182, 1
          %s874 = scalar_lea.sflag [#allocation3], %s873
          %s875 = sand.u32 %s182, 1
          %s876 = scalar_lea.vmem [#allocation2], %s875
          %877 = dma.done %s874, 16
        $region60: #{bitcn_forward.1} parent=55 // pred_fallthru
          _
      $region56: #{bitcn_forward.1} parent=5 // pred_fallthru
        _
    $region6: #{bitcn_forward.1} parent=1 // loop_footer
      %s20 = sadd.s32 1, %s16
    $region7: #{bitcn_forward.1} parent=1 // loop_footer_branch
      %15 = sbr.rel target = $region3
    $region8: #{bitcn_forward.1} parent=1 // loop_exit
      _
    %878 = vsyncpa [#allocation3], 1
    %s879 = scalar_lea.sflag [#allocation3], 1
    %880 = vsyncpa %s879, 1

</llo_original>
